<compile_context>
chip_gen: v6e
topology: v6e:2x2x1
jax: 0.10.0
libtpu: 0.0.40
codegen_flags: <defaults>
</compile_context>

<pallas_src>
import functools
import math

import jax
import jax.numpy as jnp
from jax import lax
from jax.experimental import pallas as pl
from jax.experimental.pallas import tpu as pltpu

# Module hyper-parameters (from SPLCModified.__init__ defaults).
TAU = 0.6
CHANGE_EPOCH = 1
MARGIN = 1.0
EPS = 1e-8                              # AsymmetricLoss eps

THRESH = math.log(TAU / (1.0 - TAU))    # sigmoid(x) > tau  <=>  x > logit(tau)
CLAMP = -math.log(EPS)                  # eps clamp on the per-element loss (~18.42)
PAD_LOGIT = -1.0e4                      # neutral pad: target=0, huge-negative logit -> 0 loss
SUB = 8                                 # sublane height of the per-tile partial-sum block
OUT_LANES = 128                         # lane width of the per-tile partial-sum block


def _splc_kernel(scalars_ref, logits_ref, targets_ref, out_ref, *,
                 chunk_rows, sub, needs_row_mask):
    """One grid step = one (block_rows, lanes) tile, processed in row chunks.
    Writes a lane-dense (sub, OUT_LANES) partial-sum block; the final scalar
    reduce happens in the wrapper."""
    block_rows, lanes = logits_ref.shape
    n_chunks = block_rows // chunk_rows

    # Epoch gate folded into a scalar effective threshold (no per-element AND).
    thresh = jnp.where(scalars_ref[0] >= CHANGE_EPOCH,
                       jnp.float32(THRESH), jnp.float32(jnp.inf))

    if needs_row_mask:
        # Valid rows remaining in this block (tail block of an uneven grid).
        rows_left = scalars_ref[1] - pl.program_id(0) * block_rows
        row_iota = lax.broadcasted_iota(jnp.int32, (chunk_rows, lanes), 0)

    def chunk_loss(r0, acc):
        x = logits_ref[pl.ds(r0, chunk_rows), :].astype(jnp.float32)
        t = targets_ref[pl.ds(r0, chunk_rows), :]
        is_pos = t == 1                                     # binary targets assumed
        # SPLC margin on positive labels.
        xm = jnp.where(is_pos, x - MARGIN, x)
        # SPLC promotion: y == 1 iff original positive or confident prediction.
        y_pos = jnp.logical_or(is_pos, xm > thresh)
        # BCE-with-logits with the eps clamp, for binary y:
        #   -[y*log(max(sig,eps)) + (1-y)*log(max(1-sig,eps))] = min(softplus(xm) - y*xm, -log(eps))
        softplus = jnp.maximum(xm, 0.0) + jnp.log(1.0 + jnp.exp(jnp.minimum(xm, -xm)))
        elem = jnp.minimum(softplus - jnp.where(y_pos, xm, jnp.float32(0.0)), CLAMP)
        if needs_row_mask:
            elem = jnp.where(row_iota + r0 < rows_left, elem, 0.0)
        # Fold the chunk onto (sub, lanes) with pure VPU adds (sublane-aligned reshape).
        return acc + elem.reshape(chunk_rows // sub, sub, lanes).sum(axis=0)

    acc0 = jnp.zeros((sub, lanes), jnp.float32)
    if n_chunks == 1:
        acc = chunk_loss(0, acc0)
    else:
        acc = lax.fori_loop(
            0, n_chunks,
            lambda c, a: chunk_loss(pl.multiple_of(c * chunk_rows, chunk_rows), a),
            acc0, unroll=2)

    # Lane fold onto exactly 128 lanes: tile-aligned static slices -> vreg adds.
    folded = acc[:, 0:OUT_LANES]
    for g in range(1, lanes // OUT_LANES):
        folded = folded + acc[:, g * OUT_LANES:(g + 1) * OUT_LANES]
    out_ref[...] = folded


def _round_up(n, m):
    return (n + m - 1) // m * m


def _pick_lanes(n):
    """Largest lane width that divides n -> copy-free reshape; else pad fallback."""
    for cand in (1024, 512, 256, 128):
        if n % cand == 0:
            return cand, False
    return 1024, True


@jax.jit
def splc_modified_loss(logits, targets, epoch):
    """logits: [B, C] float; targets: {0,1} ints [B, C]; epoch: scalar int.
    Targets must be binarized (the logit-form BCE identity assumes y in {0,1})."""
    n = logits.size
    lanes, needs_pad = _pick_lanes(n)

    if needs_pad:
        # Ragged tail only: pad the flat view up to one full row grid of `lanes`.
        rows = pl.cdiv(n, lanes)
        pad = rows * lanes - n
        logits2d = jnp.pad(logits.reshape(-1), (0, pad),
                           constant_values=PAD_LOGIT).reshape(rows, lanes)
        targets2d = jnp.pad(targets.reshape(-1), (0, pad),
                            constant_values=0).reshape(rows, lanes)
    else:
        # Free view: contiguous flatten + reshape, no HBM copy, no dtype cast.
        rows = n // lanes
        logits2d = logits.reshape(rows, lanes)
        targets2d = targets.reshape(rows, lanes)

    # Tile sizing: small inputs -> one full-extent block; large inputs -> blocks
    # that are multiples of 128 rows, capped at 512 and aiming for >= ~8 grid
    # steps (v7x 2-TC split + DMA/compute overlap).
    if rows <= 256:
        block_rows = rows
    else:
        block_rows = max(128, min(512, _round_up(pl.cdiv(rows, 8), 128)))
    grid = pl.cdiv(rows, block_rows)
    needs_row_mask = (rows % block_rows) != 0
    sub = SUB if block_rows % SUB == 0 else block_rows
    chunk_rows = 128 if (block_rows % 128 == 0 and block_rows > 128) else block_rows

    kernel = functools.partial(_splc_kernel,
                               chunk_rows=chunk_rows,
                               sub=sub,
                               needs_row_mask=needs_row_mask)

    scalars = jnp.stack([jnp.asarray(epoch, jnp.int32),
                         jnp.asarray(rows, jnp.int32)])

    partial_sums = pl.pallas_call(
        kernel,
        out_shape=jax.ShapeDtypeStruct((grid * sub, OUT_LANES), jnp.float32),
        grid_spec=pltpu.PrefetchScalarGridSpec(
            num_scalar_prefetch=1,                       # [epoch, valid_rows] in SMEM
            grid=(grid,),
            in_specs=[
                pl.BlockSpec((block_rows, lanes), lambda i, s: (i, 0)),
                pl.BlockSpec((block_rows, lanes), lambda i, s: (i, 0)),
            ],
            # Each step writes its own lane-dense (sub, 128) partial-sum block.
            out_specs=pl.BlockSpec((sub, OUT_LANES), lambda i, s: (i, 0)),
        ),
        compiler_params=pltpu.CompilerParams(
            dimension_semantics=("parallel",),           # independent tiles; v7x 2-TC split
            vmem_limit_bytes=32 * 1024 * 1024),          # headroom on v5e's 16 MiB default
    )(scalars, logits2d, targets2d)

    # Tiny final reduce (partial sums already hold the positive-form loss).
    return jnp.sum(partial_sums)


def _splc_reference(logits, targets, epoch):
    """Pure-JAX reference mirroring the PyTorch module exactly (sigmoid + eps clamp)."""
    logits = logits.astype(jnp.float32)
    targets = targets.astype(jnp.float32)
    logits_m = jnp.where(targets == 1.0, logits - MARGIN, logits)
    pred = jax.nn.sigmoid(logits_m)
    if epoch >= CHANGE_EPOCH:
        targets = jnp.where(pred > TAU, 1.0, targets)
    xs_pos = jnp.maximum(pred, EPS)
    xs_neg = jnp.maximum(1.0 - pred, EPS)
    loss = targets * jnp.log(xs_pos) + (1.0 - targets) * jnp.log(xs_neg)
    return -jnp.sum(loss)


if __name__ == "__main__":
    key = jax.random.PRNGKey(0)

    # (shape, epochs) cases: copy-free even path, ragged pad path, multi-block path.
    cases = [((16, 32), (2, 0)),        # n=512  -> lanes=512, single block, no pad
             ((3, 7), (2,)),            # n=21   -> pad fallback, neutral tail
             ((1101, 128), (2,))]       # n=140928 -> lanes=128, grid=5, fori chunks, row mask

    for (B, C), epochs in cases:
        key, k_logits, k_targets = jax.random.split(key, 3)
        logits = jax.random.normal(k_logits, (B, C), dtype=jnp.float32) * 2.0
        targets = jax.random.bernoulli(k_targets, p=0.3, shape=(B, C)).astype(jnp.int32)
        for epoch in epochs:
            loss = jax.block_until_ready(splc_modified_loss(logits, targets, epoch))
            ref = _splc_reference(logits, targets, epoch)
            assert jnp.allclose(loss, ref, rtol=1e-4, atol=1e-2), ((B, C), epoch, loss, ref)

    print("KERNEL_OK")
</pallas_src>

<mosaic_0001>
module attributes {stable_mosaic.version = 11 : i64} {
  func.func @_splc_kernel(%arg0: i32, %arg1: memref<2xi32, #tpu.memory_space<smem>>, %arg2: memref<1x512xf32, #tpu.memory_space<vmem>>, %arg3: memref<1x512xi32, #tpu.memory_space<vmem>>, %arg4: memref<1x128xf32, #tpu.memory_space<vmem>>) attributes {dimension_semantics = [#tpu.dimension_semantics<parallel>], iteration_bounds = array<i64: 1>, scalar_prefetch = 1 : i64, scratch_operands = 0 : i64, tpu.core_type = #tpu.core_type<tc>, window_params = [{transform_indices = @transform_0, window_bounds = array<i64: 1, 512>}, {transform_indices = @transform_1, window_bounds = array<i64: 1, 512>}, {transform_indices = @transform_2, window_bounds = array<i64: 1, 128>}]} {
    %c0 = arith.constant 0 : index
    %0 = memref.load %arg1[%c0] : memref<2xi32, #tpu.memory_space<smem>>
    %c1_i32 = arith.constant 1 : i32
    %1 = arith.cmpi sge, %0, %c1_i32 : i32
    %cst = arith.constant 0.405465096 : f32
    %cst_0 = arith.constant 0x7F800000 : f32
    %2 = arith.select %1, %cst, %cst_0 : f32
    %cst_1 = arith.constant 0.000000e+00 : f32
    %3 = vector.broadcast %cst_1 : f32 to vector<1x512xf32>
    %c0_2 = arith.constant 0 : index
    %c0_3 = arith.constant 0 : index
    %4 = vector.load %arg2[%c0_2, %c0_3] : memref<1x512xf32, #tpu.memory_space<vmem>>, vector<1x512xf32>
    %c0_4 = arith.constant 0 : index
    %c0_5 = arith.constant 0 : index
    %5 = vector.load %arg3[%c0_4, %c0_5] : memref<1x512xi32, #tpu.memory_space<vmem>>, vector<1x512xi32>
    %c1_i32_6 = arith.constant 1 : i32
    %6 = vector.broadcast %c1_i32_6 : i32 to vector<1x512xi32>
    %7 = arith.cmpi eq, %5, %6 : vector<1x512xi32>
    %cst_7 = arith.constant 1.000000e+00 : f32
    %8 = vector.broadcast %cst_7 : f32 to vector<1x512xf32>
    %9 = arith.subf %4, %8 : vector<1x512xf32>
    %10 = arith.select %7, %9, %4 : vector<1x512xi1>, vector<1x512xf32>
    %11 = vector.broadcast %2 : f32 to vector<1x512xf32>
    %12 = arith.cmpf ogt, %10, %11 : vector<1x512xf32>
    %13 = arith.ori %7, %12 : vector<1x512xi1>
    %cst_8 = arith.constant 0.000000e+00 : f32
    %14 = vector.broadcast %cst_8 : f32 to vector<1x512xf32>
    %15 = arith.maximumf %10, %14 : vector<1x512xf32>
    %cst_9 = arith.constant 0.000000e+00 : f32
    %16 = vector.broadcast %cst_9 : f32 to vector<1x512xf32>
    %17 = arith.subf %16, %10 : vector<1x512xf32>
    %18 = arith.minimumf %10, %17 : vector<1x512xf32>
    %19 = math.exp %18 : vector<1x512xf32>
    %cst_10 = arith.constant 1.000000e+00 : f32
    %20 = vector.broadcast %cst_10 : f32 to vector<1x512xf32>
    %21 = arith.addf %20, %19 : vector<1x512xf32>
    %22 = math.log %21 : vector<1x512xf32>
    %23 = arith.addf %15, %22 : vector<1x512xf32>
    %cst_11 = arith.constant 0.000000e+00 : f32
    %24 = vector.broadcast %cst_11 : f32 to vector<1x512xf32>
    %25 = arith.select %13, %10, %24 : vector<1x512xi1>, vector<1x512xf32>
    %26 = arith.subf %23, %25 : vector<1x512xf32>
    %cst_12 = arith.constant 18.420681 : f32
    %27 = vector.broadcast %cst_12 : f32 to vector<1x512xf32>
    %28 = arith.minimumf %26, %27 : vector<1x512xf32>
    %29 = vector.shape_cast %28 : vector<1x512xf32> to vector<1x1x512xf32>
    %cst_13 = arith.constant dense<0.000000e+00> : vector<1x512xf32>
    %30 = vector.multi_reduction <add>, %29, %cst_13 [0] : vector<1x1x512xf32> to vector<1x512xf32>
    %31 = arith.addf %3, %30 : vector<1x512xf32>
    %32 = vector.extract_strided_slice %31 {offsets = [0, 0], sizes = [1, 128], strides = [1, 1]} : vector<1x512xf32> to vector<1x128xf32>
    %33 = vector.extract_strided_slice %31 {offsets = [0, 128], sizes = [1, 128], strides = [1, 1]} : vector<1x512xf32> to vector<1x128xf32>
    %34 = arith.addf %32, %33 : vector<1x128xf32>
    %35 = vector.extract_strided_slice %31 {offsets = [0, 256], sizes = [1, 128], strides = [1, 1]} : vector<1x512xf32> to vector<1x128xf32>
    %36 = arith.addf %34, %35 : vector<1x128xf32>
    %37 = vector.extract_strided_slice %31 {offsets = [0, 384], sizes = [1, 128], strides = [1, 1]} : vector<1x512xf32> to vector<1x128xf32>
    %38 = arith.addf %36, %37 : vector<1x128xf32>
    %c0_14 = arith.constant 0 : index
    %c0_15 = arith.constant 0 : index
    %39 = vector.load %arg4[%c0_14, %c0_15] : memref<1x128xf32, #tpu.memory_space<vmem>>, vector<1x128xf32>
    tpu.vector_store %arg4[%c0_14, %c0_15], %38 {strides = array<i32>} : memref<1x128xf32, #tpu.memory_space<vmem>>, vector<1x128xf32>,
    return
  }
  func.func @transform_0(%arg0: i32, %arg1: memref<2xi32, #tpu.memory_space<smem>>) -> (i32, i32) {
    %c0_i32 = arith.constant 0 : i32
    %c0_i32_0 = arith.constant 0 : i32
    return %arg0, %c0_i32 : i32, i32
  }
  func.func @transform_1(%arg0: i32, %arg1: memref<2xi32, #tpu.memory_space<smem>>) -> (i32, i32) {
    %c0_i32 = arith.constant 0 : i32
    %c0_i32_0 = arith.constant 0 : i32
    return %arg0, %c0_i32 : i32, i32
  }
  func.func @transform_2(%arg0: i32, %arg1: memref<2xi32, #tpu.memory_space<smem>>) -> (i32, i32) {
    %c0_i32 = arith.constant 0 : i32
    %c0_i32_0 = arith.constant 0 : i32
    return %arg0, %c0_i32 : i32, i32
  }
}

</mosaic_0001>

<llo_original>
// kernel: splc_modified_loss.1
$region0: #{splc_modified_loss.1}
  #allocation0 [shape = 'u32[]', space=smem, size = 0x4, offset = 0x4, fixed_abs, tag = 'smem constant byte address 0x4 - core index']
  #allocation1 [shape = 'u32[144,128]{1,0:T(1,128)}', space=vmem, size = 0x12000, scoped, tag = 'internal scratch']
  #allocation2 [shape = 's32[1]{0}', space=sflag, size = 0x4, scoped, tag = 'scoped memory for splc_modified_loss.1']
  #allocation3 [shape = 'u8[512]{0}', space=smem, size = 0x200, scoped, tag = 'prefetched SMEM operand 0']
  %s0 = inlined_call_operand.vmem [shape: s32[2], index: 0, kind: input, shape index: {}]
  %s1 = inlined_call_operand.vmem [shape: f32[1,512], index: 1, kind: input, shape index: {}]
  %s2 = inlined_call_operand.vmem [shape: s32[1,512], index: 2, kind: input, shape index: {}]
  %s3 = inlined_call_operand.vmem [shape: f32[1,128], index: 3, kind: output, shape index: {}]
  %s4 = sld [smem:[#allocation0]]
  $region18: #{splc_modified_loss.1} parent=0
    _
  %s6 = ssub.s32 1, %s4
  %s7 = scalar_select 0, %s6, %s4
  %s8 = sshll.u32 %s0, 4
  %s9 = int_to_ptr.vmem [resolvable:$true] %s8
  %11 = dma.vmem_to_smem %s9, 16, [#allocation3], [#allocation2]
  %12 = dma.done [#allocation2], 16
  %13 = sfence
  // Predicated region
  $region2: #{splc_modified_loss.1} parent=0 // pred_check
    _
  $region3: #{splc_modified_loss.1} parent=0 // pred_check_branch
    %15 = sbr.rel (0) target = $region5
  $region4: #{splc_modified_loss.1} parent=0 // pred_region
    _
  $region5: #{splc_modified_loss.1} parent=0 // pred_fallthru
    _
  // Predicated region
  $region6: #{splc_modified_loss.1} parent=0 // pred_check
    _
  $region7: #{splc_modified_loss.1} parent=0 // pred_check_branch
    %17 = sbr.rel (0) target = $region9
  $region8: #{splc_modified_loss.1} parent=0 // pred_region
    _
  $region9: #{splc_modified_loss.1} parent=0 // pred_fallthru
    _
  %s18 = sld [smem:[#allocation3]]
  %p19 = scmp.ge.s32.totalorder %s18, 1
  %s20 = scalar_select %p19, 0.4054651, inf
  %v21 = vld [vmem:[%s1] sm:$0xf]
  %v22 = vld [vmem:[%s2] sm:$0xf]
  %vm23 = vcmp.eq.s32.totalorder %v22, 1
  %v24 = vsub.f32 %v21, 1.0
  %v25 = vsel %vm23, %v24, %v21
  %v26 = vstv %s20
  %vm27 = vcmp.gt.f32.partialorder %v25, %v26
  %vm28 = vmor %vm23, %vm27
  %v29 = vmax.f32 %v25, 0.0
  %v30 = vsub.f32 0.0, %v25
  %v31 = vmin.f32 %v25, %v30
  %v32 = vmul.f32 %v31, 1.442695
  %v33 = vpow.pop %v32
  %v34 = vadd.f32 %v33, 1.0
  %v35 = vlog2.pop %v34
  %v36 = vmul.f32 %v35, 0.6931472
  %v37 = vadd.f32 %v29, %v36
  %v38 = vsel %vm28, %v25, 0.0
  %v39 = vsub.f32 %v37, %v38
  %v40 = vmin.f32 %v39, 18.420681
  %v41 = vadd.f32 %v40, 0.0
  %v42 = vadd.f32 %v41, 0.0
  %v44 = vrot.slane %v42, 1
  %v46 = vadd.f32 %v42, %v44
  %v47 = vrot.slane %v42, 2
  %v49 = vadd.f32 %v46, %v47
  %v50 = vrot.slane %v42, 3
  %v52 = vadd.f32 %v49, %v50
  %53 = vst [vmem:[%s3] sm:$0x1] %v52
  // Predicated region
  $region10: #{splc_modified_loss.1} parent=0 // pred_check
    _
  $region11: #{splc_modified_loss.1} parent=0 // pred_check_branch
    %55 = sbr.rel (0) target = $region13
  $region12: #{splc_modified_loss.1} parent=0 // pred_region
    _
  $region13: #{splc_modified_loss.1} parent=0 // pred_fallthru
    _
  // Predicated region
  $region14: #{splc_modified_loss.1} parent=0 // pred_check
    _
  $region15: #{splc_modified_loss.1} parent=0 // pred_check_branch
    %57 = sbr.rel (0) target = $region17
  $region16: #{splc_modified_loss.1} parent=0 // pred_region
    _
  $region17: #{splc_modified_loss.1} parent=0 // pred_fallthru
    _

</llo_original>
